<compile_context>
chip_gen: v7x
topology: tpu7x:2x2x1
jax: 0.10.0
libtpu: 0.0.40
codegen_flags: <defaults>
</compile_context>

<pallas_src>
import jax
import jax.numpy as jnp
from jax.experimental import pallas as pl
from jax.experimental.pallas import tpu as pltpu


# ---------------------------------------------------------------------------
# Kernel
# ---------------------------------------------------------------------------
def _mlp_kernel(xT_ref, w1_ref, b1_ref, w2_ref, b2_ref, w3_ref, b3_ref, o_ref):
    # xT_ref: (num_inputs, TB) bf16   weights: (out, in) bf16   biases: (out, 1) f32
    xT = xT_ref[...]

    # Layer 1: (30, num_inputs) @ (num_inputs, TB) -> (30, TB), f32 accumulation.
    h1 = jnp.dot(w1_ref[...], xT, preferred_element_type=jnp.float32) + b1_ref[...]
    h1 = jnp.maximum(h1, 0.0).astype(jnp.bfloat16)

    # Layer 2: (20, 30) @ (30, TB) -> (20, TB)
    h2 = jnp.dot(w2_ref[...], h1, preferred_element_type=jnp.float32) + b2_ref[...]
    h2 = jnp.maximum(h2, 0.0).astype(jnp.bfloat16)

    # Layer 3: (num_outputs, 20) @ (20, TB) -> (num_outputs, TB)
    logits = jnp.dot(w3_ref[...], h2, preferred_element_type=jnp.float32) + b3_ref[...]
    o_ref[...] = logits.astype(o_ref.dtype)


# ---------------------------------------------------------------------------
# Tile-size selection
# ---------------------------------------------------------------------------
def _round_up(n, m):
    return ((n + m - 1) // m) * m


def _pick_tb(batch, num_inputs, num_outputs, out_dtype, tb=None,
             vmem_budget_bytes=10 << 20):
    """Pick the batch-tile width (lane axis), multiple of 128.

    Per-column VMEM cost estimate:
      2 * num_inputs * 2 B   (double-buffered bf16 x tile)
    + 2 * num_outputs * out  (double-buffered output tile)
    + (30 + 20) * (4 + 2) B  (f32 + bf16 copies of h1/h2 intermediates)
    The 10 MiB budget keeps us safely inside even v5e's 16 MiB default scoped
    VMEM; v6e (32/128 MiB) and v7x (32/64 MiB) have more headroom.
    """
    if tb is not None:
        return max(128, _round_up(int(tb), 128))

    out_bytes = jnp.dtype(out_dtype).itemsize
    per_col = 2 * num_inputs * 2 + 2 * num_outputs * out_bytes + (30 + 20) * 6
    tb_max = (vmem_budget_bytes // per_col) // 128 * 128
    tb_max = max(128, min(16384, tb_max))

    full = _round_up(batch, 128)
    if full <= 128:
        return 128                      # one small block; no padding waste
    # Prefer at least 2 blocks so a "parallel" grid axis can feed both v7x TCs.
    half = _round_up(pl.cdiv(batch, 2), 128)
    return min(tb_max, half)


# ---------------------------------------------------------------------------
# Forward wrappers
# ---------------------------------------------------------------------------
def mlp_forward_feature_major(xT, params, *, tb=None, out_dtype=jnp.float32):
    """Feature-major forward.  xT: (num_inputs, B).  Returns (num_outputs, B).

    This entry point avoids the (B, F) <-> (F, B) transpose HBM passes for
    callers that already keep activations feature-major.
    """
    w1, b1, w2, b2, w3, b3 = (
        params["w1"], params["b1"], params["w2"],
        params["b2"], params["w3"], params["b3"],
    )
    num_inputs, batch = xT.shape
    num_outputs = w3.shape[0]

    tb = _pick_tb(batch, num_inputs, num_outputs, out_dtype, tb)
    n_blocks = pl.cdiv(batch, tb)
    b_pad = n_blocks * tb

    xTb = xT.astype(jnp.bfloat16)
    if b_pad != batch:
        xTb = jnp.pad(xTb, ((0, 0), (0, b_pad - batch)))

    w1b = w1.astype(jnp.bfloat16)
    w2b = w2.astype(jnp.bfloat16)
    w3b = w3.astype(jnp.bfloat16)

    # Resident (grid-invariant) spec for the small weights / biases.
    def resident(a):
        nd = a.ndim
        return pl.BlockSpec(a.shape, lambda i, _nd=nd: (0,) * _nd)

    outT = pl.pallas_call(
        _mlp_kernel,
        out_shape=jax.ShapeDtypeStruct((num_outputs, b_pad), out_dtype),
        grid_spec=pltpu.PrefetchScalarGridSpec(
            num_scalar_prefetch=0,
            grid=(n_blocks,),
            in_specs=[
                pl.BlockSpec((num_inputs, tb), lambda i: (0, i)),  # pipelined x tile
                resident(w1b), resident(b1),
                resident(w2b), resident(b2),
                resident(w3b), resident(b3),
            ],
            out_specs=pl.BlockSpec((num_outputs, tb), lambda i: (0, i)),
        ),
        compiler_params=pltpu.CompilerParams(
            dimension_semantics=("parallel",),
        ),
    )(xTb, w1b, b1, w2b, b2, w3b, b3)

    return outT[:, :batch]


def neural_network_forward(x, params, *, tb=None, out_dtype=jnp.float32):
    """PyTorch-layout forward.  x: (B, num_inputs) f32 -> (B, num_outputs).

    The transpose + cast here are one fused XLA pass; for hot paths prefer
    mlp_forward_feature_major and keep activations feature-major end to end.
    """
    outT = mlp_forward_feature_major(x.T, params, tb=tb, out_dtype=out_dtype)
    return outT.T


# ---------------------------------------------------------------------------
# Params + pure-JAX reference
# ---------------------------------------------------------------------------
def init_params(key, num_inputs, num_outputs):
    """PyTorch-Linear-style init: U(-1/sqrt(fan_in), 1/sqrt(fan_in)).

    Weights stored (out_features, in_features); biases stored (out_features, 1).
    """
    dims = [(num_inputs, 30), (30, 20), (20, num_outputs)]
    params = {}
    for i, (fan_in, fan_out) in enumerate(dims, start=1):
        key, kw, kb = jax.random.split(key, 3)
        bound = 1.0 / jnp.sqrt(float(fan_in))
        params[f"w{i}"] = jax.random.uniform(
            kw, (fan_out, fan_in), jnp.float32, -bound, bound)
        params[f"b{i}"] = jax.random.uniform(
            kb, (fan_out, 1), jnp.float32, -bound, bound)
    return params


def reference_forward(x, params):
    """Pure-JAX reference emulating the kernel's bf16 operands + f32 accumulation."""
    bf = lambda a: a.astype(jnp.bfloat16)
    h1 = jnp.dot(bf(params["w1"]), bf(x.T),
                 preferred_element_type=jnp.float32) + params["b1"]
    h1 = jnp.maximum(h1, 0.0)
    h2 = jnp.dot(bf(params["w2"]), bf(h1),
                 preferred_element_type=jnp.float32) + params["b2"]
    h2 = jnp.maximum(h2, 0.0)
    out = jnp.dot(bf(params["w3"]), bf(h2),
                  preferred_element_type=jnp.float32) + params["b3"]
    return out.T


# ---------------------------------------------------------------------------
# Self-test
# ---------------------------------------------------------------------------
if __name__ == "__main__":
    key = jax.random.PRNGKey(0)
    num_inputs, num_outputs, batch = 4, 3, 8

    key, kx = jax.random.split(key)
    x = jax.random.normal(kx, (batch, num_inputs), jnp.float32)
    params = init_params(key, num_inputs, num_outputs)

    # 1) Small batch: auto tb clamps to one 128-wide block (minimal padding).
    logits = jax.block_until_ready(neural_network_forward(x, params))
    ref = reference_forward(x, params)
    assert logits.shape == (batch, num_outputs)
    assert jnp.allclose(logits, ref, atol=1e-3, rtol=1e-3)

    # 2) Larger batch, auto tb: splits into >=2 grid blocks (both v7x TCs busy),
    #    exercises the padded-tail slice.
    key, kx2 = jax.random.split(key)
    x2 = jax.random.normal(kx2, (300, num_inputs), jnp.float32)
    logits2 = jax.block_until_ready(neural_network_forward(x2, params))
    ref2 = reference_forward(x2, params)
    assert logits2.shape == (300, num_outputs)
    assert jnp.allclose(logits2, ref2, atol=1e-3, rtol=1e-3)

    # 3) Explicit small tb (multi-block pipelining path) + non-multiple-of-128
    #    tb gets rounded up by the wrapper instead of violating (8,128).
    logits3 = jax.block_until_ready(neural_network_forward(x2, params, tb=200))
    assert jnp.allclose(logits3, ref2, atol=1e-3, rtol=1e-3)

    # 4) Feature-major entry point + bf16 output path (halved writeback bytes).
    xT = x2.T
    out_fm = jax.block_until_ready(
        mlp_forward_feature_major(xT, params, out_dtype=jnp.bfloat16))
    assert out_fm.shape == (num_outputs, 300)
    assert out_fm.dtype == jnp.bfloat16
    assert jnp.allclose(out_fm.astype(jnp.float32).T, ref2, atol=2e-2, rtol=2e-2)

    print("KERNEL_OK")
</pallas_src>

<mosaic_0001>
module attributes {stable_mosaic.version = 11 : i64} {
  func.func @_mlp_kernel(%arg0: i32, %arg1: memref<4x128xbf16, #tpu.memory_space<vmem>>, %arg2: memref<30x4xbf16, #tpu.memory_space<vmem>>, %arg3: memref<30x1xf32, #tpu.memory_space<vmem>>, %arg4: memref<20x30xbf16, #tpu.memory_space<vmem>>, %arg5: memref<20x1xf32, #tpu.memory_space<vmem>>, %arg6: memref<3x20xbf16, #tpu.memory_space<vmem>>, %arg7: memref<3x1xf32, #tpu.memory_space<vmem>>, %arg8: memref<3x128xf32, #tpu.memory_space<vmem>>) attributes {dimension_semantics = [#tpu.dimension_semantics<parallel>], iteration_bounds = array<i64: 1>, scalar_prefetch = 0 : i64, scratch_operands = 0 : i64, tpu.core_type = #tpu.core_type<tc>, window_params = [{transform_indices = @transform_0, window_bounds = array<i64: 4, 128>}, {pipeline_mode = #tpu.pipeline_mode<synchronous>, transform_indices = @transform_1, window_bounds = array<i64: 30, 4>}, {pipeline_mode = #tpu.pipeline_mode<synchronous>, transform_indices = @transform_2, window_bounds = array<i64: 30, 1>}, {pipeline_mode = #tpu.pipeline_mode<synchronous>, transform_indices = @transform_3, window_bounds = array<i64: 20, 30>}, {pipeline_mode = #tpu.pipeline_mode<synchronous>, transform_indices = @transform_4, window_bounds = array<i64: 20, 1>}, {pipeline_mode = #tpu.pipeline_mode<synchronous>, transform_indices = @transform_5, window_bounds = array<i64: 3, 20>}, {pipeline_mode = #tpu.pipeline_mode<synchronous>, transform_indices = @transform_6, window_bounds = array<i64: 3, 1>}, {transform_indices = @transform_7, window_bounds = array<i64: 3, 128>}]} {
    %c0 = arith.constant 0 : index
    %c0_0 = arith.constant 0 : index
    %0 = vector.load %arg1[%c0, %c0_0] : memref<4x128xbf16, #tpu.memory_space<vmem>>, vector<4x128xbf16>
    %c0_1 = arith.constant 0 : index
    %c0_2 = arith.constant 0 : index
    %1 = vector.load %arg2[%c0_1, %c0_2] : memref<30x4xbf16, #tpu.memory_space<vmem>>, vector<30x4xbf16>
    %cst = arith.constant dense<0.000000e+00> : vector<30x128xf32>
    %2 = tpu.matmul %1, %0, %cst {dimension_numbers = #tpu.dot_dimension_numbers<[1], [0], [0], [1], [0, 0, 1, 1], [], []>} : vector<30x4xbf16>, vector<4x128xbf16>, vector<30x128xf32> -> vector<30x128xf32>
    %c0_3 = arith.constant 0 : index
    %c0_4 = arith.constant 0 : index
    %3 = vector.load %arg3[%c0_3, %c0_4] : memref<30x1xf32, #tpu.memory_space<vmem>>, vector<30x1xf32>
    %4 = vector.broadcast %3 : vector<30x1xf32> to vector<30x128xf32>
    %5 = arith.addf %2, %4 : vector<30x128xf32>
    %cst_5 = arith.constant 0.000000e+00 : f32
    %6 = vector.broadcast %cst_5 : f32 to vector<30x128xf32>
    %7 = arith.maximumf %5, %6 : vector<30x128xf32>
    %8 = arith.truncf %7 : vector<30x128xf32> to vector<30x128xbf16>
    %c0_6 = arith.constant 0 : index
    %c0_7 = arith.constant 0 : index
    %9 = vector.load %arg4[%c0_6, %c0_7] : memref<20x30xbf16, #tpu.memory_space<vmem>>, vector<20x30xbf16>
    %cst_8 = arith.constant dense<0.000000e+00> : vector<20x128xf32>
    %10 = tpu.matmul %9, %8, %cst_8 {dimension_numbers = #tpu.dot_dimension_numbers<[1], [0], [0], [1], [0, 0, 1, 1], [], []>} : vector<20x30xbf16>, vector<30x128xbf16>, vector<20x128xf32> -> vector<20x128xf32>
    %c0_9 = arith.constant 0 : index
    %c0_10 = arith.constant 0 : index
    %11 = vector.load %arg5[%c0_9, %c0_10] : memref<20x1xf32, #tpu.memory_space<vmem>>, vector<20x1xf32>
    %12 = vector.broadcast %11 : vector<20x1xf32> to vector<20x128xf32>
    %13 = arith.addf %10, %12 : vector<20x128xf32>
    %cst_11 = arith.constant 0.000000e+00 : f32
    %14 = vector.broadcast %cst_11 : f32 to vector<20x128xf32>
    %15 = arith.maximumf %13, %14 : vector<20x128xf32>
    %16 = arith.truncf %15 : vector<20x128xf32> to vector<20x128xbf16>
    %c0_12 = arith.constant 0 : index
    %c0_13 = arith.constant 0 : index
    %17 = vector.load %arg6[%c0_12, %c0_13] : memref<3x20xbf16, #tpu.memory_space<vmem>>, vector<3x20xbf16>
    %cst_14 = arith.constant dense<0.000000e+00> : vector<3x128xf32>
    %18 = tpu.matmul %17, %16, %cst_14 {dimension_numbers = #tpu.dot_dimension_numbers<[1], [0], [0], [1], [0, 0, 1, 1], [], []>} : vector<3x20xbf16>, vector<20x128xbf16>, vector<3x128xf32> -> vector<3x128xf32>
    %c0_15 = arith.constant 0 : index
    %c0_16 = arith.constant 0 : index
    %19 = vector.load %arg7[%c0_15, %c0_16] : memref<3x1xf32, #tpu.memory_space<vmem>>, vector<3x1xf32>
    %20 = vector.broadcast %19 : vector<3x1xf32> to vector<3x128xf32>
    %21 = arith.addf %18, %20 : vector<3x128xf32>
    %c0_17 = arith.constant 0 : index
    %c0_18 = arith.constant 0 : index
    %22 = vector.load %arg8[%c0_17, %c0_18] : memref<3x128xf32, #tpu.memory_space<vmem>>, vector<3x128xf32>
    tpu.vector_store %arg8[%c0_17, %c0_18], %21 {strides = array<i32>} : memref<3x128xf32, #tpu.memory_space<vmem>>, vector<3x128xf32>,
    return
  }
  func.func @transform_0(%arg0: i32) -> (i32, i32) {
    %c0_i32 = arith.constant 0 : i32
    %c0_i32_0 = arith.constant 0 : i32
    return %c0_i32, %arg0 : i32, i32
  }
  func.func @transform_1(%arg0: i32) -> (i32, i32) {
    %c0_i32 = arith.constant 0 : i32
    %c0_i32_0 = arith.constant 0 : i32
    %c0_i32_1 = arith.constant 0 : i32
    return %c0_i32, %c0_i32_0 : i32, i32
  }
  func.func @transform_2(%arg0: i32) -> (i32, i32) {
    %c0_i32 = arith.constant 0 : i32
    %c0_i32_0 = arith.constant 0 : i32
    %c0_i32_1 = arith.constant 0 : i32
    return %c0_i32, %c0_i32_0 : i32, i32
  }
  func.func @transform_3(%arg0: i32) -> (i32, i32) {
    %c0_i32 = arith.constant 0 : i32
    %c0_i32_0 = arith.constant 0 : i32
    %c0_i32_1 = arith.constant 0 : i32
    return %c0_i32, %c0_i32_0 : i32, i32
  }
  func.func @transform_4(%arg0: i32) -> (i32, i32) {
    %c0_i32 = arith.constant 0 : i32
    %c0_i32_0 = arith.constant 0 : i32
    %c0_i32_1 = arith.constant 0 : i32
    return %c0_i32, %c0_i32_0 : i32, i32
  }
  func.func @transform_5(%arg0: i32) -> (i32, i32) {
    %c0_i32 = arith.constant 0 : i32
    %c0_i32_0 = arith.constant 0 : i32
    %c0_i32_1 = arith.constant 0 : i32
    return %c0_i32, %c0_i32_0 : i32, i32
  }
  func.func @transform_6(%arg0: i32) -> (i32, i32) {
    %c0_i32 = arith.constant 0 : i32
    %c0_i32_0 = arith.constant 0 : i32
    %c0_i32_1 = arith.constant 0 : i32
    return %c0_i32, %c0_i32_0 : i32, i32
  }
  func.func @transform_7(%arg0: i32) -> (i32, i32) {
    %c0_i32 = arith.constant 0 : i32
    %c0_i32_0 = arith.constant 0 : i32
    return %c0_i32, %arg0 : i32, i32
  }
}

</mosaic_0001>

<llo_original>
// kernel: tpu_custom_call.1
$region0: #{tpu_custom_call.1}
  #allocation0 [shape = 'u32[]', space=smem, size = 0x4, offset = 0x4, fixed_abs, tag = 'smem constant byte address 0x4 - core index']
  #allocation1 [shape = 'u32[144,128]{1,0:T(1,128)}', space=vmem, size = 0x12000, scoped, tag = 'internal scratch']
  %s0 = inlined_call_operand.vmem [shape: bf16[4,128], index: 0, kind: input, shape index: {}]
  %s1 = inlined_call_operand.vmem [shape: bf16[30,4], index: 1, kind: input, shape index: {}]
  %s2 = inlined_call_operand.vmem [shape: f32[30,1], index: 2, kind: input, shape index: {}]
  %s3 = inlined_call_operand.vmem [shape: bf16[20,30], index: 3, kind: input, shape index: {}]
  %s4 = inlined_call_operand.vmem [shape: f32[20,1], index: 4, kind: input, shape index: {}]
  %s5 = inlined_call_operand.vmem [shape: bf16[3,20], index: 5, kind: input, shape index: {}]
  %s6 = inlined_call_operand.vmem [shape: f32[3,1], index: 6, kind: input, shape index: {}]
  %s7 = inlined_call_operand.hbm [shape: f32[3,128], index: 7, kind: output, shape index: {}]
  %s8 = sld [smem:[#allocation0]]
  $region38: #{tpu_custom_call.1} parent=0
    _
  %s10 = ssub.s32 1, %s8
  %s11 = scalar_select 0, %s10, %s8
  $region1: #{tpu_custom_call.1} parent=0
    #allocation2 [shape = 'u8[2048]{0}', space=vmem, size = 0x800, scoped, tag = 'output window, operand 0, single buffered']
    #allocation3 [shape = 's32[1]{0}', space=sflag, size = 0x4, scoped, tag = 'scoped memory for tpu_custom_call.1']
    %12 = vsyncpa [#allocation3], 0
    // Predicated region
    $region2: #{tpu_custom_call.1} parent=1 // pred_check
      _
    $region3: #{tpu_custom_call.1} parent=1 // pred_check_branch
      %14 = sbr.rel (0) target = $region5
    $region4: #{tpu_custom_call.1} parent=1 // pred_region
      _
    $region5: #{tpu_custom_call.1} parent=1 // pred_fallthru
      _
    // Predicated region
    $region6: #{tpu_custom_call.1} parent=1 // pred_check
      _
    $region7: #{tpu_custom_call.1} parent=1 // pred_check_branch
      %16 = sbr.rel (0) target = $region9
    $region8: #{tpu_custom_call.1} parent=1 // pred_region
      _
    $region9: #{tpu_custom_call.1} parent=1 // pred_fallthru
      _
    // Predicated region
    $region10: #{tpu_custom_call.1} parent=1 // pred_check
      _
    $region11: #{tpu_custom_call.1} parent=1 // pred_check_branch
      %18 = sbr.rel (0) target = $region13
    $region12: #{tpu_custom_call.1} parent=1 // pred_region
      _
    $region13: #{tpu_custom_call.1} parent=1 // pred_fallthru
      _
    // Predicated region
    $region14: #{tpu_custom_call.1} parent=1 // pred_check
      _
    $region15: #{tpu_custom_call.1} parent=1 // pred_check_branch
      %20 = sbr.rel (0) target = $region17
    $region16: #{tpu_custom_call.1} parent=1 // pred_region
      _
    $region17: #{tpu_custom_call.1} parent=1 // pred_fallthru
      _
    // Predicated region
    $region18: #{tpu_custom_call.1} parent=1 // pred_check
      _
    $region19: #{tpu_custom_call.1} parent=1 // pred_check_branch
      %22 = sbr.rel (0) target = $region21
    $region20: #{tpu_custom_call.1} parent=1 // pred_region
      _
    $region21: #{tpu_custom_call.1} parent=1 // pred_fallthru
      _
    // Predicated region
    $region22: #{tpu_custom_call.1} parent=1 // pred_check
      _
    $region23: #{tpu_custom_call.1} parent=1 // pred_check_branch
      %24 = sbr.rel (0) target = $region25
    $region24: #{tpu_custom_call.1} parent=1 // pred_region
      _
    $region25: #{tpu_custom_call.1} parent=1 // pred_fallthru
      _
    // Predicated region
    $region26: #{tpu_custom_call.1} parent=1 // pred_check
      _
    $region27: #{tpu_custom_call.1} parent=1 // pred_check_branch
      %26 = sbr.rel (0) target = $region29
    $region28: #{tpu_custom_call.1} parent=1 // pred_region
      _
    $region29: #{tpu_custom_call.1} parent=1 // pred_fallthru
      _
    %v28 = vld [vmem:[%s0] sm:$0x3]
    %v29 = vld [vmem:[%s1] sm:$0xf]
    %v30 = vld [vmem:[%s1 + $0x4] sm:$0xf]
    %v31 = vld [vmem:[%s1 + $0x8] sm:$0xf]
    %v32 = vld [vmem:[%s1 + $0xc] sm:$0x7]
    %v33 = vld [vmem:[%s2] sm:$0xff]
    %v34 = vld [vmem:[%s2 + $0x8] sm:$0xff]
    %v35 = vld [vmem:[%s2 + $0x10] sm:$0xff]
    %v36 = vld [vmem:[%s2 + $0x18] sm:$0x3f]
    %38 = vset.pattern.permute.xlu0 0
    %39 = vperm.xlu0 %38, %v33
    %v40 = vpop.permute.xlu0 %39
    %43 = vset.pattern.permute.xlu0 0
    %44 = vperm.xlu0 %43, %v34
    %v45 = vpop.permute.xlu0 %44
    %48 = vset.pattern.permute.xlu0 0
    %49 = vperm.xlu0 %48, %v35
    %v50 = vpop.permute.xlu0 %49
    %53 = vset.pattern.permute.xlu0 0
    %54 = vperm.xlu0 %53, %v36
    %v55 = vpop.permute.xlu0 %54
    %v61 = vunpack.c.l.b16 %v29
    %v62 = vunpack.c.l.b16 %v30
    %v63 = vunpack.c.l.b16 %v31
    %v64 = vunpack.c.l.b16 %v32
    %v65 = vpack.c.b16 %v62, %v61
    %v66 = vpack.c.b16 %v64, %v63
    %vm67 = vcmask 31744
    %v69 = vsel %vm67, %v65, 0
    %v72 = vsel %vm67, %v66, 0
    %vm74 = vcmask 1041408
    %v76 = vsel %vm74, %v28, 0
    %78 = vmatprep.subr.bf16.mxu0 0
    %79 = vmatpush1.bf16.msra.mxu0 %v76
    %80 = vmatprep.subr.bf16.mxu0 0
    %81 = vmatpush1.bf16.msra.mxu0 0
    %82 = vmatprep.subr.bf16.mxu0 0
    %83 = vmatpush1.bf16.msra.mxu0 0
    %84 = vmatprep.subr.bf16.mxu0 0
    %85 = vmatpush1.bf16.msra.mxu0 0
    %86 = vmatprep.subr.bf16.mxu0 0
    %87 = vmatpush1.bf16.msra.mxu0 0
    %88 = vmatprep.subr.bf16.mxu0 0
    %89 = vmatpush1.bf16.msra.mxu0 0
    %90 = vmatprep.subr.bf16.mxu0 0
    %91 = vmatpush1.bf16.msra.mxu0 0
    %92 = vmatprep.subr.bf16.mxu0 0
    %93 = vmatpush1.bf16.msra.mxu0 0
    %94 = vmatprep.subr.bf16.mxu0 0
    %95 = vmatpush1.bf16.msra.mxu0 0
    %96 = vmatprep.subr.bf16.mxu0 0
    %97 = vmatpush1.bf16.msra.mxu0 0
    %98 = vmatprep.subr.bf16.mxu0 0
    %99 = vmatpush1.bf16.msra.mxu0 0
    %100 = vmatprep.subr.bf16.mxu0 0
    %101 = vmatpush1.bf16.msra.mxu0 0
    %102 = vmatprep.subr.bf16.mxu0 0
    %103 = vmatpush1.bf16.msra.mxu0 0
    %104 = vmatprep.subr.bf16.mxu0 0
    %105 = vmatpush1.bf16.msra.mxu0 0
    %106 = vmatprep.subr.bf16.mxu0 0
    %107 = vmatpush1.bf16.msra.mxu0 0
    %108 = vmatprep.subr.bf16.mxu0 0
    %109 = vmatpush1.bf16.msra.mxu0 0
    %110 = vmatprep.mubr.bf16.mxu0 0
    %111 = vmatmul.mubr.bf16.gmra.mrb[0].mxu0 %v69
    %v112 = vpop.f32.mrb[0].mxu0
    %v113 = vadd.f32 %v40, %v112
    %v114 = vpop.f32.mrb[0].mxu0
    %v115 = vpop.f32.mrb[0].mxu0
    %v116 = vadd.f32 %v45, %v115
    %v117 = vpop.f32.mrb[0].mxu0
    %118 = vmatprep.mubr.bf16.mxu0 0
    %119 = vmatmul.mubr.bf16.gmra.mrb[0].mxu0 %v72
    %v120 = vpop.f32.mrb[0].mxu0
    %v121 = vadd.f32 %v50, %v120
    %v122 = vpop.f32.mrb[0].mxu0
    %v123 = vpop.f32.mrb[0].mxu0
    %v124 = vadd.f32 %v55, %v123
    %v125 = vpop.f32.mrb[0].mxu0
    %126 = vdwg.mxu0
    %v127 = vmax.f32 %v113, 0.0
    %v128 = vmax.f32 %v116, 0.0
    %v129 = vmax.f32 %v121, 0.0
    %v130 = vmax.f32 %v124, 0.0
    %v131 = vpack.c.bf16 %v128, %v127
    %v132 = vpack.c.bf16 %v130, %v129
    %v133 = vld [vmem:[%s3] sm:$0xf]
    %v134 = vld [vmem:[%s3 + $0x4] sm:$0xf]
    %v135 = vld [vmem:[%s3 + $0x8] sm:$0x3]
    %v136 = vld [vmem:[%s4] sm:$0xff]
    %v137 = vld [vmem:[%s4 + $0x8] sm:$0xff]
    %v138 = vld [vmem:[%s4 + $0x10] sm:$0xf]
    %140 = vset.pattern.permute.xlu0 0
    %141 = vperm.xlu0 %140, %v136
    %v142 = vpop.permute.xlu0 %141
    %145 = vset.pattern.permute.xlu0 0
    %146 = vperm.xlu0 %145, %v137
    %v147 = vpop.permute.xlu0 %146
    %150 = vset.pattern.permute.xlu0 0
    %151 = vperm.xlu0 %150, %v138
    %v152 = vpop.permute.xlu0 %151
    %v157 = vunpack.c.l.b16 %v133
    %v158 = vunpack.c.l.b16 %v134
    %v159 = vunpack.c.l.b16 %v135
    %v160 = vpack.c.b16 %v158, %v157
    %v161 = vpack.c.b16 %v159, %v159
    %vm162 = vcmask 244736
    %v164 = vsel %vm162, %v160, 0
    %v167 = vsel %vm162, %v161, 0
    %vm169 = vcmask 1046528
    %v171 = vsel %vm169, %v132, 0
    %173 = vmatprep.subr.bf16.mxu0 0
    %174 = vmatpush1.bf16.msra.mxu0 %v131
    %175 = vmatprep.subr.bf16.mxu0 0
    %176 = vmatpush1.bf16.msra.mxu0 %v171
    %177 = vmatprep.subr.bf16.mxu0 0
    %178 = vmatpush1.bf16.msra.mxu0 0
    %179 = vmatprep.subr.bf16.mxu0 0
    %180 = vmatpush1.bf16.msra.mxu0 0
    %181 = vmatprep.subr.bf16.mxu0 0
    %182 = vmatpush1.bf16.msra.mxu0 0
    %183 = vmatprep.subr.bf16.mxu0 0
    %184 = vmatpush1.bf16.msra.mxu0 0
    %185 = vmatprep.subr.bf16.mxu0 0
    %186 = vmatpush1.bf16.msra.mxu0 0
    %187 = vmatprep.subr.bf16.mxu0 0
    %188 = vmatpush1.bf16.msra.mxu0 0
    %189 = vmatprep.subr.bf16.mxu0 0
    %190 = vmatpush1.bf16.msra.mxu0 0
    %191 = vmatprep.subr.bf16.mxu0 0
    %192 = vmatpush1.bf16.msra.mxu0 0
    %193 = vmatprep.subr.bf16.mxu0 0
    %194 = vmatpush1.bf16.msra.mxu0 0
    %195 = vmatprep.subr.bf16.mxu0 0
    %196 = vmatpush1.bf16.msra.mxu0 0
    %197 = vmatprep.subr.bf16.mxu0 0
    %198 = vmatpush1.bf16.msra.mxu0 0
    %199 = vmatprep.subr.bf16.mxu0 0
    %200 = vmatpush1.bf16.msra.mxu0 0
    %201 = vmatprep.subr.bf16.mxu0 0
    %202 = vmatpush1.bf16.msra.mxu0 0
    %203 = vmatprep.subr.bf16.mxu0 0
    %204 = vmatpush1.bf16.msra.mxu0 0
    %205 = vmatprep.mubr.bf16.mxu0 0
    %206 = vmatmul.mubr.bf16.gmra.mrb[0].mxu0 %v164
    %v207 = vpop.f32.mrb[0].mxu0
    %v208 = vadd.f32 %v142, %v207
    %v209 = vpop.f32.mrb[0].mxu0
    %v210 = vpop.f32.mrb[0].mxu0
    %v211 = vadd.f32 %v147, %v210
    %v212 = vpop.f32.mrb[0].mxu0
    %213 = vmatprep.mubr.bf16.mxu0 0
    %214 = vmatmul.mubr.bf16.gmra.mrb[0].mxu0 %v167
    %v215 = vpop.f32.mrb[0].mxu0
    %v216 = vadd.f32 %v152, %v215
    %v217 = vpop.f32.mrb[0].mxu0
    %v218 = vpop.f32.mrb[0].mxu0
    %v219 = vpop.f32.mrb[0].mxu0
    %220 = vdwg.mxu0
    %v221 = vmax.f32 %v208, 0.0
    %v222 = vmax.f32 %v211, 0.0
    %v223 = vmax.f32 %v216, 0.0
    %v224 = vpack.c.bf16 %v222, %v221
    %v225 = vpack.c.bf16 %v223, %v223
    %v226 = vld [vmem:[%s5] sm:$0x3]
    %v227 = vld [vmem:[%s6] sm:$0x7]
    %229 = vset.pattern.permute.xlu0 0
    %230 = vperm.xlu0 %229, %v227
    %v231 = vpop.permute.xlu0 %230
    %vm233 = vcmask 162816
    %v235 = vsel %vm233, %v226, 0
    %v238 = vsel %vm74, %v225, 0
    %240 = vmatprep.subr.bf16.mxu0 0
    %241 = vmatpush1.bf16.msra.mxu0 %v224
    %242 = vmatprep.subr.bf16.mxu0 0
    %243 = vmatpush1.bf16.msra.mxu0 %v238
    %244 = vmatprep.subr.bf16.mxu0 0
    %245 = vmatpush1.bf16.msra.mxu0 0
    %246 = vmatprep.subr.bf16.mxu0 0
    %247 = vmatpush1.bf16.msra.mxu0 0
    %248 = vmatprep.subr.bf16.mxu0 0
    %249 = vmatpush1.bf16.msra.mxu0 0
    %250 = vmatprep.subr.bf16.mxu0 0
    %251 = vmatpush1.bf16.msra.mxu0 0
    %252 = vmatprep.subr.bf16.mxu0 0
    %253 = vmatpush1.bf16.msra.mxu0 0
    %254 = vmatprep.subr.bf16.mxu0 0
    %255 = vmatpush1.bf16.msra.mxu0 0
    %256 = vmatprep.subr.bf16.mxu0 0
    %257 = vmatpush1.bf16.msra.mxu0 0
    %258 = vmatprep.subr.bf16.mxu0 0
    %259 = vmatpush1.bf16.msra.mxu0 0
    %260 = vmatprep.subr.bf16.mxu0 0
    %261 = vmatpush1.bf16.msra.mxu0 0
    %262 = vmatprep.subr.bf16.mxu0 0
    %263 = vmatpush1.bf16.msra.mxu0 0
    %264 = vmatprep.subr.bf16.mxu0 0
    %265 = vmatpush1.bf16.msra.mxu0 0
    %266 = vmatprep.subr.bf16.mxu0 0
    %267 = vmatpush1.bf16.msra.mxu0 0
    %268 = vmatprep.subr.bf16.mxu0 0
    %269 = vmatpush1.bf16.msra.mxu0 0
    %270 = vmatprep.subr.bf16.mxu0 0
    %271 = vmatpush1.bf16.msra.mxu0 0
    %272 = vmatprep.mubr.bf16.mxu0 0
    %273 = vmatmul.mubr.bf16.gmra.mrb[0].mxu0 %v235
    %v274 = vpop.f32.mrb[0].mxu0
    %v275 = vadd.f32 %v231, %v274
    %v276 = vpop.f32.mrb[0].mxu0
    %v277 = vpop.f32.mrb[0].mxu0
    %v278 = vpop.f32.mrb[0].mxu0
    %279 = vdwg.mxu0
    %280 = vst [vmem:[#allocation2] sm:$0x7] %v275
    // Predicated region
    $region30: #{tpu_custom_call.1} parent=1 // pred_check
      _
    $region31: #{tpu_custom_call.1} parent=1 // pred_check_branch
      %282 = sbr.rel (0) target = $region33
    $region32: #{tpu_custom_call.1} parent=1 // pred_region
      %s284 = ssub.s32 64, 64
      %285 = vsyncadd [#allocation3], %s284
      %s287 = sshll.u32 [#allocation2], 4
      %s288 = int_to_ptr.vmem [resolvable:$true] %s287
      %290 = dma.vmem_to_hbm [thread:$0]  %s288, 64, %s7, [#allocation3]
    $region33: #{tpu_custom_call.1} parent=1 // pred_fallthru
      _
    // Predicated region
    $region34: #{tpu_custom_call.1} parent=1 // pred_check
      _
    $region35: #{tpu_custom_call.1} parent=1 // pred_check_branch
      %292 = sbr.rel (0) target = $region37
    $region36: #{tpu_custom_call.1} parent=1 // pred_region
      %293 = dma.done [#allocation3], 64
    $region37: #{tpu_custom_call.1} parent=1 // pred_fallthru
      _
    %294 = vsyncpa [#allocation3], 1

</llo_original>
